<compile_context>
chip_gen: v6e
topology: v6e:2x2x1
jax: 0.10.0
libtpu: 0.0.40
codegen_flags: <defaults>
</compile_context>

<pallas_src>
import functools

import jax
import jax.numpy as jnp
import numpy as np
from jax.experimental import pallas as pl
from jax.experimental.pallas import tpu as pltpu


# ----------------------------------------------------------------------------
# Kernel: one tile of points -> fused (x @ W') + b' -> LeakyReLU(0.1)
# ----------------------------------------------------------------------------
def linear_block_kernel(x_ref, w_ref, b_ref, o_ref, *, no_relu):
    # x_ref : (tn, in_dim)      bf16 (or f32)
    # w_ref : (in_dim, out_dim) bf16 -- BN scale already folded into columns
    # b_ref : (1, out_dim)      f32  -- folded BN shift (or plain bias)
    # o_ref : (tn, out_dim)     bf16 (or f32)
    y = jnp.dot(x_ref[...], w_ref[...], preferred_element_type=jnp.float32)
    y = y + b_ref[...]
    if not no_relu:
        y = jnp.maximum(y, 0.1 * y)          # LeakyReLU(0.1): mul + max
    o_ref[...] = y.astype(o_ref.dtype)


# ----------------------------------------------------------------------------
# Wrapper
# ----------------------------------------------------------------------------
def linear_block_forward(x, w_folded, b_folded, *, no_relu=False, tn=1024,
                         out_dtype=None):
    """x: (N, in_dim). w_folded: (in_dim, out_dim). b_folded: (1, out_dim)."""
    N, in_dim = x.shape
    out_dim = w_folded.shape[1]
    if out_dtype is None:
        out_dtype = x.dtype

    # Clamp the tile to the (8-aligned) problem size; rely on Pallas' ragged
    # last-block handling instead of padding/slicing in the wrapper (which
    # would add a full extra HBM pass over x and over the output).
    tn = int(max(8, min(tn, 8 * pl.cdiv(N, 8))))
    grid = (pl.cdiv(N, tn),)

    kernel = functools.partial(linear_block_kernel, no_relu=no_relu)

    return pl.pallas_call(
        kernel,
        out_shape=jax.ShapeDtypeStruct((N, out_dim), out_dtype),
        grid_spec=pltpu.PrefetchScalarGridSpec(
            num_scalar_prefetch=0,
            grid=grid,
            in_specs=[
                pl.BlockSpec((tn, in_dim), lambda i: (i, 0)),
                pl.BlockSpec((in_dim, out_dim), lambda i: (0, 0)),
                pl.BlockSpec((1, out_dim), lambda i: (0, 0)),
            ],
            out_specs=pl.BlockSpec((tn, out_dim), lambda i: (i, 0)),
        ),
        compiler_params=pltpu.CompilerParams(
            dimension_semantics=("parallel",)),
    )(x, w_folded, b_folded)


# ----------------------------------------------------------------------------
# Parameter construction / folding (eval-mode BatchNorm)
# ----------------------------------------------------------------------------
def fold_params(w_torch, *, use_bn, bn_params=None, bias=None, eps=1e-5,
                weight_dtype=jnp.bfloat16):
    """w_torch: (out_dim, in_dim) torch nn.Linear layout.

    Returns (w_folded (in_dim, out_dim), b_folded (1, out_dim)) so that
    x @ w_folded + b_folded == BN_eval(x @ w_torch.T)  (or + bias if no BN).
    """
    out_dim = w_torch.shape[0]
    if use_bn:
        gamma, beta, mean, var = bn_params
        scale = gamma / jnp.sqrt(var + eps)
        shift = beta - mean * scale
    else:
        scale = jnp.ones((out_dim,), jnp.float32)
        shift = bias if bias is not None else jnp.zeros((out_dim,), jnp.float32)
    w_folded = (w_torch.astype(jnp.float32) * scale[:, None]).T   # (in, out)
    b_folded = shift.reshape(1, out_dim).astype(jnp.float32)
    return w_folded.astype(weight_dtype), b_folded


def init_params(key, in_dim, out_dim):
    """Deterministic init mirroring nn.Linear(bias=False) + eval BatchNorm1d."""
    bound = 1.0 / np.sqrt(in_dim)
    w = jax.random.uniform(key, (out_dim, in_dim), jnp.float32, -bound, bound)

    idx = jnp.arange(out_dim, dtype=jnp.float32)
    gamma = 1.0 + 0.01 * idx
    beta = 0.02 * idx
    mean = 0.001 * idx
    var = 1.0 + 0.05 * idx
    return w, (gamma, beta, mean, var)


# ----------------------------------------------------------------------------
# Pure-JAX reference matching the PyTorch forward (eval-mode BN)
# ----------------------------------------------------------------------------
def reference_forward(x, w_torch, *, use_bn, bn_params=None, bias=None,
                      no_relu=False, eps=1e-5):
    y = jnp.dot(x, w_torch.T, precision=jax.lax.Precision.HIGHEST)
    if use_bn:
        gamma, beta, mean, var = bn_params
        y = (y - mean) / jnp.sqrt(var + eps) * gamma + beta
    else:
        if bias is not None:
            y = y + bias
    if not no_relu:
        y = jnp.where(y >= 0.0, y, 0.1 * y)
    return y


if __name__ == "__main__":
    N, in_dim, out_dim = 1000, 64, 128   # small; out_dim lane-dense (128)
    tn = 256                             # 4 grid steps + ragged tail for the demo

    key = jax.random.PRNGKey(0)
    kx, kw = jax.random.split(key)
    # Activations carried in bf16 (as the surrounding model would), no wrapper cast.
    x = jax.random.normal(kx, (N, in_dim), jnp.float32).astype(jnp.bfloat16)
    w_torch, bn_params = init_params(kw, in_dim, out_dim)

    w_folded, b_folded = fold_params(w_torch, use_bn=True, bn_params=bn_params)

    out = linear_block_forward(x, w_folded, b_folded, no_relu=False, tn=tn,
                               out_dtype=jnp.bfloat16)
    out = jax.block_until_ready(out)

    ref = jax.block_until_ready(
        reference_forward(x.astype(jnp.float32), w_torch, use_bn=True,
                          bn_params=bn_params, no_relu=False))

    # bf16 weight/output vs f32 HIGHEST reference (f32 MXU accumulation).
    np.testing.assert_allclose(np.asarray(out.astype(jnp.float32)),
                               np.asarray(ref), rtol=3e-2, atol=3e-2)

    print("KERNEL_OK")
</pallas_src>

<mosaic_0001>
module attributes {stable_mosaic.version = 11 : i64} {
  func.func @linear_block_kernel(%arg0: i32, %arg1: memref<256x64xbf16, #tpu.memory_space<vmem>>, %arg2: memref<64x128xbf16, #tpu.memory_space<vmem>>, %arg3: memref<1x128xf32, #tpu.memory_space<vmem>>, %arg4: memref<256x128xbf16, #tpu.memory_space<vmem>>) attributes {dimension_semantics = [#tpu.dimension_semantics<parallel>], iteration_bounds = array<i64: 4>, scalar_prefetch = 0 : i64, scratch_operands = 0 : i64, tpu.core_type = #tpu.core_type<tc>, window_params = [{transform_indices = @transform_0, window_bounds = array<i64: 256, 64>}, {pipeline_mode = #tpu.pipeline_mode<synchronous>, transform_indices = @transform_1, window_bounds = array<i64: 64, 128>}, {pipeline_mode = #tpu.pipeline_mode<synchronous>, transform_indices = @transform_2, window_bounds = array<i64: 1, 128>}, {transform_indices = @transform_3, window_bounds = array<i64: 256, 128>}]} {
    %c0 = arith.constant 0 : index
    %c0_0 = arith.constant 0 : index
    %0 = vector.load %arg1[%c0, %c0_0] : memref<256x64xbf16, #tpu.memory_space<vmem>>, vector<256x64xbf16>
    %c0_1 = arith.constant 0 : index
    %c0_2 = arith.constant 0 : index
    %1 = vector.load %arg2[%c0_1, %c0_2] : memref<64x128xbf16, #tpu.memory_space<vmem>>, vector<64x128xbf16>
    %cst = arith.constant dense<0.000000e+00> : vector<256x128xf32>
    %2 = tpu.matmul %0, %1, %cst {dimension_numbers = #tpu.dot_dimension_numbers<[1], [0], [0], [1], [0, 0, 1, 1], [], []>} : vector<256x64xbf16>, vector<64x128xbf16>, vector<256x128xf32> -> vector<256x128xf32>
    %c0_3 = arith.constant 0 : index
    %c0_4 = arith.constant 0 : index
    %3 = vector.load %arg3[%c0_3, %c0_4] : memref<1x128xf32, #tpu.memory_space<vmem>>, vector<1x128xf32>
    %4 = vector.broadcast %3 : vector<1x128xf32> to vector<256x128xf32>
    %5 = arith.addf %2, %4 : vector<256x128xf32>
    %cst_5 = arith.constant 1.000000e-01 : f32
    %6 = vector.broadcast %cst_5 : f32 to vector<256x128xf32>
    %7 = arith.mulf %6, %5 : vector<256x128xf32>
    %8 = arith.maximumf %5, %7 : vector<256x128xf32>
    %9 = arith.truncf %8 : vector<256x128xf32> to vector<256x128xbf16>
    %c0_6 = arith.constant 0 : index
    %c0_7 = arith.constant 0 : index
    %10 = vector.load %arg4[%c0_6, %c0_7] : memref<256x128xbf16, #tpu.memory_space<vmem>>, vector<256x128xbf16>
    tpu.vector_store %arg4[%c0_6, %c0_7], %9 {strides = array<i32>} : memref<256x128xbf16, #tpu.memory_space<vmem>>, vector<256x128xbf16>,
    return
  }
  func.func @transform_0(%arg0: i32) -> (i32, i32) {
    %c0_i32 = arith.constant 0 : i32
    %c0_i32_0 = arith.constant 0 : i32
    return %arg0, %c0_i32 : i32, i32
  }
  func.func @transform_1(%arg0: i32) -> (i32, i32) {
    %c0_i32 = arith.constant 0 : i32
    %c0_i32_0 = arith.constant 0 : i32
    %c0_i32_1 = arith.constant 0 : i32
    return %c0_i32, %c0_i32_0 : i32, i32
  }
  func.func @transform_2(%arg0: i32) -> (i32, i32) {
    %c0_i32 = arith.constant 0 : i32
    %c0_i32_0 = arith.constant 0 : i32
    %c0_i32_1 = arith.constant 0 : i32
    return %c0_i32, %c0_i32_0 : i32, i32
  }
  func.func @transform_3(%arg0: i32) -> (i32, i32) {
    %c0_i32 = arith.constant 0 : i32
    %c0_i32_0 = arith.constant 0 : i32
    return %arg0, %c0_i32 : i32, i32
  }
}

</mosaic_0001>

<llo_original>
// kernel: tpu_custom_call.1
$region0: #{tpu_custom_call.1}
  #allocation0 [shape = 'u32[]', space=smem, size = 0x4, offset = 0x4, fixed_abs, tag = 'smem constant byte address 0x4 - core index']
  #allocation1 [shape = 'u32[144,128]{1,0:T(1,128)}', space=vmem, size = 0x12000, scoped, tag = 'internal scratch']
  %s0 = inlined_call_operand.vmem [shape: bf16[1000,64], index: 0, kind: input, shape index: {}]
  %s1 = inlined_call_operand.vmem [shape: bf16[64,128], index: 1, kind: input, shape index: {}]
  %s2 = inlined_call_operand.vmem [shape: f32[1,128], index: 2, kind: input, shape index: {}]
  %s3 = inlined_call_operand.hbm [shape: bf16[1000,128], index: 3, kind: output, shape index: {}]
  %s4 = sld [smem:[#allocation0]]
  $region45: #{tpu_custom_call.1} parent=0
    _
  %s6 = ssub.s32 1, %s4
  %s7 = scalar_select 0, %s6, %s4
  $region1: #{tpu_custom_call.1} parent=0
    #allocation2 [shape = 'u8[131072]{0}', space=vmem, size = 0x20000, scoped, tag = 'output window, operand 0']
    #allocation3 [shape = 's32[2]{0}', space=sflag, size = 0x8, scoped, tag = 'scoped memory for tpu_custom_call.1']
    %8 = vsyncpa [#allocation3], 0
    %s9 = scalar_lea.sflag [#allocation3], 1
    %10 = vsyncpa %s9, 0
    loop: start=0, step=1, limit=6
    $region2: #{tpu_custom_call.1} parent=1 // loop_pre_header
      _
    $region3: #{tpu_custom_call.1} parent=1 // loop_header
      %s12 = sphi 0, %s16
      %p13 = scmp.ge.s32.totalorder %s12, 6
      %s22 = sphi 0, %s24
      %s25 = sphi 0, %s22
      %s26 = sphi 0, %s25
      %s42 = sphi 0, %s26
      %s46 = sphi 0, %s46
      %s48 = sphi 0, %s46
      %s49 = sphi 0, %s48
      %s63 = sphi 0, %s49
      %s67 = sphi 0, %s67
      %s69 = sphi 0, %s67
      %s70 = sphi 0, %s69
      %s84 = sphi 0, %s70
      %s90 = sphi 0, %s92
      %s93 = sphi 0, %s90
      %s94 = sphi 0, %s93
      %s110 = sphi 0, %s94
    $region4: #{tpu_custom_call.1} parent=1 // loop_header_branch
      %15 = sbr.rel (%p13) target = $region8
    $region5: #{tpu_custom_call.1} parent=1 // loop_body
      %s17 = ssub.s32 %s12, 1
      %s18 = ssub.s32 %s12, 2
      %s19 = sadd.s32 %s12, 1
      %s20 = ssub.s32 %s12, %s19
      %p21 = scmp.eq.s32.totalorder %s20, 0
      %s23 = sadd.s32 %s22, 1
      %s24 = scalar_select %p21, %s22, %s23
      %p27 = pneg %p21
      %p28 = scmp.eq.s32.totalorder %s12, 3
      %p29 = por %p27, %p28
      %p30 = scmp.ne.s32.totalorder %s22, %s25
      %p31 = scmp.eq.s32.totalorder %s12, 0
      %p32 = por %p30, %p31
      %p33 = scmp.ne.s32.totalorder %s22, %s25
      %p34 = scmp.eq.s32.totalorder %s17, 3
      %p35 = por %p33, %p34
      %p36 = scmp.ne.s32.totalorder %s25, %s26
      %p37 = scmp.eq.s32.totalorder %s17, 0
      %p38 = por %p36, %p37
      %p39 = scmp.ne.s32.totalorder %s25, %s26
      %p40 = scmp.eq.s32.totalorder %s18, 3
      %p41 = por %p39, %p40
      %p43 = scmp.ne.s32.totalorder %s26, %s42
      %p44 = scmp.eq.s32.totalorder %s18, 0
      %p45 = por %p43, %p44
      %s47 = sadd.s32 %s46, 1
      %p50 = scmp.eq.s32.totalorder %s12, 3
      %p51 = scmp.ne.s32.totalorder %s46, %s48
      %p52 = scmp.eq.s32.totalorder %s12, 0
      %p53 = por %p51, %p52
      %p54 = scmp.ne.s32.totalorder %s46, %s48
      %p55 = scmp.eq.s32.totalorder %s17, 3
      %p56 = por %p54, %p55
      %p57 = scmp.ne.s32.totalorder %s48, %s49
      %p58 = scmp.eq.s32.totalorder %s17, 0
      %p59 = por %p57, %p58
      %p60 = scmp.ne.s32.totalorder %s48, %s49
      %p61 = scmp.eq.s32.totalorder %s18, 3
      %p62 = por %p60, %p61
      %p64 = scmp.ne.s32.totalorder %s49, %s63
      %p65 = scmp.eq.s32.totalorder %s18, 0
      %p66 = por %p64, %p65
      %s68 = sadd.s32 %s67, 1
      %p71 = scmp.eq.s32.totalorder %s12, 3
      %p72 = scmp.ne.s32.totalorder %s67, %s69
      %p73 = scmp.eq.s32.totalorder %s12, 0
      %p74 = por %p72, %p73
      %p75 = scmp.ne.s32.totalorder %s67, %s69
      %p76 = scmp.eq.s32.totalorder %s17, 3
      %p77 = por %p75, %p76
      %p78 = scmp.ne.s32.totalorder %s69, %s70
      %p79 = scmp.eq.s32.totalorder %s17, 0
      %p80 = por %p78, %p79
      %p81 = scmp.ne.s32.totalorder %s69, %s70
      %p82 = scmp.eq.s32.totalorder %s18, 3
      %p83 = por %p81, %p82
      %p85 = scmp.ne.s32.totalorder %s70, %s84
      %p86 = scmp.eq.s32.totalorder %s18, 0
      %p87 = por %p85, %p86
      %s88 = ssub.s32 %s12, %s19
      %p89 = scmp.eq.s32.totalorder %s88, 0
      %s91 = sadd.s32 %s90, 1
      %s92 = scalar_select %p89, %s90, %s91
      %p95 = pneg %p89
      %p96 = scmp.eq.s32.totalorder %s12, 3
      %p97 = por %p95, %p96
      %p98 = scmp.ne.s32.totalorder %s90, %s93
      %p99 = scmp.eq.s32.totalorder %s12, 0
      %p100 = por %p98, %p99
      %p101 = scmp.ne.s32.totalorder %s90, %s93
      %p102 = scmp.eq.s32.totalorder %s17, 3
      %p103 = por %p101, %p102
      %p104 = scmp.ne.s32.totalorder %s93, %s94
      %p105 = scmp.eq.s32.totalorder %s17, 0
      %p106 = por %p104, %p105
      %p107 = scmp.ne.s32.totalorder %s93, %s94
      %p108 = scmp.eq.s32.totalorder %s18, 3
      %p109 = por %p107, %p108
      %p111 = scmp.ne.s32.totalorder %s94, %s110
      %p112 = scmp.eq.s32.totalorder %s18, 0
      %p113 = por %p111, %p112
      %p114 = scmp.le.s32.totalorder 1, %s12
      %p115 = scmp.lt.s32.totalorder %s12, 5
      %p116 = pnand %p114, %p115
      %p117 = pneg %p116
      // Predicated region
      $region9: #{tpu_custom_call.1} parent=5 // pred_check
        _
      $region10: #{tpu_custom_call.1} parent=5 // pred_check_branch
        %119 = sbr.rel (%p116) target = $region12
      $region11: #{tpu_custom_call.1} parent=5 // pred_region
        %s120 = ssub.s32 %s12, 1
        // Predicated region
        $region13: #{tpu_custom_call.1} parent=11 // pred_check
          %p121 = pneg %p59
        $region14: #{tpu_custom_call.1} parent=11 // pred_check_branch
          %123 = sbr.rel (%p121) target = $region16
        $region15: #{tpu_custom_call.1} parent=11 // pred_region
          _
        $region16: #{tpu_custom_call.1} parent=11 // pred_fallthru
          _
        // Predicated region
        $region17: #{tpu_custom_call.1} parent=11 // pred_check
          %p124 = pneg %p80
        $region18: #{tpu_custom_call.1} parent=11 // pred_check_branch
          %126 = sbr.rel (%p124) target = $region20
        $region19: #{tpu_custom_call.1} parent=11 // pred_region
          _
        $region20: #{tpu_custom_call.1} parent=11 // pred_fallthru
          _
      $region12: #{tpu_custom_call.1} parent=5 // pred_fallthru
        _
      %p127 = scmp.lt.s32.totalorder %s12, 4
      // Predicated region
      $region21: #{tpu_custom_call.1} parent=5 // pred_check
        %p128 = pneg %p127
      $region22: #{tpu_custom_call.1} parent=5 // pred_check_branch
        %130 = sbr.rel (%p128) target = $region24
      $region23: #{tpu_custom_call.1} parent=5 // pred_region
        // Predicated region
        $region25: #{tpu_custom_call.1} parent=23 // pred_check
          %p131 = pneg %p32
        $region26: #{tpu_custom_call.1} parent=23 // pred_check_branch
          %133 = sbr.rel (%p131) target = $region28
        $region27: #{tpu_custom_call.1} parent=23 // pred_region
          %s134 = smul.u32 32, %s12
          %s135 = ssub.s32 125, %s134
          %p136 = scmp.lt.s32.totalorder %s135, 32
          %s137 = scalar_select %p136, %s135, 32
          %s138 = smul.u32 64, %s137
          %p139 = scmp.lt.s32.totalorder %s134, 124
          %s140 = scalar_select %p139, %s134, 124
          %s141 = smul.addr %s140, 4
          %s142 = scalar_lea.vmem %s0, %s141
          %s143 = smul.u32 32, %s12
          %s144 = ssub.s32 125, %s143
          %p145 = scmp.lt.s32.totalorder %s144, 32
          %s146 = scalar_select %p145, %s144, 32
          %s147 = smul.u32 64, %s146
        $region28: #{tpu_custom_call.1} parent=23 // pred_fallthru
          _
      $region24: #{tpu_custom_call.1} parent=5 // pred_fallthru
        _
      %p148 = scmp.le.s32.totalorder 1, %s12
      %p149 = scmp.lt.s32.totalorder %s12, 5
      %p150 = pnand %p148, %p149
      %p151 = pneg %p150
      // Predicated region
      $region29: #{tpu_custom_call.1} parent=5 // pred_check
        _
      $region30: #{tpu_custom_call.1} parent=5 // pred_check_branch
        %153 = sbr.rel (%p150) target = $region32
      $region31: #{tpu_custom_call.1} parent=5 // pred_region
        %s154 = ssub.s32 %s12, 1
        %s155 = smul.u32 32, %s17
        %s156 = ssub.s32 125, %s155
        %p157 = scmp.lt.s32.totalorder %s156, 32
        %s158 = scalar_select %p157, %s156, 32
        %s159 = smul.u32 64, %s158
        %p160 = scmp.lt.s32.totalorder %s155, 124
        %s161 = scalar_select %p160, %s155, 124
        %s162 = smul.addr %s161, 4
        %s163 = scalar_lea.vmem %s0, %s162
        %p164 = pneg %p38
        %p165 = pneg %p35
        %p166 = pneg %p59
        %p167 = pneg %p56
        %p168 = pneg %p80
        %p169 = pneg %p77
        %p170 = pneg %p106
        %p171 = pneg %p103
        %s172 = sand.u32 %s93, 1
        %s173 = scalar_lea.sflag [#allocation3], %s172
        %s174 = sand.u32 %s93, 1
        %s175 = smul.addr %s174, 128
        %s176 = scalar_lea.vmem [#allocation2], %s175
        %s177 = smul.u32 32, %s17
        %s178 = ssub.s32 125, %s177
        %p179 = scmp.lt.s32.totalorder %s178, 32
        %s180 = scalar_select %p179, %s178, 32
        %s181 = smul.u32 64, %s180
        %p182 = scmp.lt.s32.totalorder %s177, 124
        %s183 = scalar_select %p182, %s177, 124
        %s184 = smul.addr %s183, 4
        %s185 = scalar_lea.vmem %s0, %s184
        %s186 = smul.u32 32, %s17
        %s187 = ssub.s32 125, %s186
        %p188 = scmp.lt.s32.totalorder %s187, 32
        %s189 = scalar_select %p188, %s187, 32
        %s190 = smul.u32 64, %s189
        %s191 = smul.u32 32, %s17
        %s192 = ssub.s32 125, %s191
        %p193 = scmp.lt.s32.totalorder %s192, 32
        %s194 = scalar_select %p193, %s192, 32
        %s195 = smul.u32 64, %s194
        %v197 = vld [vmem:[%s185] sm:$0xf]
        %v198 = vld [vmem:[%s185 + $0x4] sm:$0xf]
        %v199 = vld [vmem:[%s185 + $0x8] sm:$0xf]
        %v200 = vld [vmem:[%s185 + $0xc] sm:$0xf]
        %v201 = vld [vmem:[%s185 + $0x10] sm:$0xf]
        %v202 = vld [vmem:[%s185 + $0x14] sm:$0xf]
        %v203 = vld [vmem:[%s185 + $0x18] sm:$0xf]
        %v204 = vld [vmem:[%s185 + $0x1c] sm:$0xf]
        %v205 = vld [vmem:[%s185 + $0x20] sm:$0xf]
        %v206 = vld [vmem:[%s185 + $0x24] sm:$0xf]
        %v207 = vld [vmem:[%s185 + $0x28] sm:$0xf]
        %v208 = vld [vmem:[%s185 + $0x2c] sm:$0xf]
        %v209 = vld [vmem:[%s185 + $0x30] sm:$0xf]
        %v210 = vld [vmem:[%s185 + $0x34] sm:$0xf]
        %v211 = vld [vmem:[%s185 + $0x38] sm:$0xf]
        %v212 = vld [vmem:[%s185 + $0x3c] sm:$0xf]
        %v213 = vld [vmem:[%s185 + $0x40] sm:$0xf]
        %v214 = vld [vmem:[%s185 + $0x44] sm:$0xf]
        %v215 = vld [vmem:[%s185 + $0x48] sm:$0xf]
        %v216 = vld [vmem:[%s185 + $0x4c] sm:$0xf]
        %v217 = vld [vmem:[%s185 + $0x50] sm:$0xf]
        %v218 = vld [vmem:[%s185 + $0x54] sm:$0xf]
        %v219 = vld [vmem:[%s185 + $0x58] sm:$0xf]
        %v220 = vld [vmem:[%s185 + $0x5c] sm:$0xf]
        %v221 = vld [vmem:[%s185 + $0x60] sm:$0xf]
        %v222 = vld [vmem:[%s185 + $0x64] sm:$0xf]
        %v223 = vld [vmem:[%s185 + $0x68] sm:$0xf]
        %v224 = vld [vmem:[%s185 + $0x6c] sm:$0xf]
        %v225 = vld [vmem:[%s185 + $0x70] sm:$0xf]
        %v226 = vld [vmem:[%s185 + $0x74] sm:$0xf]
        %v227 = vld [vmem:[%s185 + $0x78] sm:$0xf]
        %v228 = vld [vmem:[%s185 + $0x7c] sm:$0xf]
        %v229 = vld [vmem:[%s1] sm:$0xf]
        %v230 = vld [vmem:[%s1 + $0x4] sm:$0xf]
        %v231 = vld [vmem:[%s1 + $0x8] sm:$0xf]
        %v232 = vld [vmem:[%s1 + $0xc] sm:$0xf]
        %v233 = vld [vmem:[%s1 + $0x10] sm:$0xf]
        %v234 = vld [vmem:[%s1 + $0x14] sm:$0xf]
        %v235 = vld [vmem:[%s1 + $0x18] sm:$0xf]
        %v236 = vld [vmem:[%s1 + $0x1c] sm:$0xf]
        %v237 = vld [vmem:[%s2] sm:$0x1]
        %v239 = vlaneseq
        %v240 = vshrl.u32 %v239, 7
        %v241 = vsub.s32 0, %v240
        %v242 = vrot.slane %v237, %v241
        %v276 = vunpack.c.l.b16 %v197
        %v277 = vunpack.c.l.b16 %v198
        %v278 = vunpack.c.l.b16 %v199
        %v279 = vunpack.c.l.b16 %v200
        %v280 = vunpack.c.l.b16 %v201
        %v281 = vunpack.c.l.b16 %v202
        %v282 = vunpack.c.l.b16 %v203
        %v283 = vunpack.c.l.b16 %v204
        %v284 = vunpack.c.l.b16 %v205
        %v285 = vunpack.c.l.b16 %v206
        %v286 = vunpack.c.l.b16 %v207
        %v287 = vunpack.c.l.b16 %v208
        %v288 = vunpack.c.l.b16 %v209
        %v289 = vunpack.c.l.b16 %v210
        %v290 = vunpack.c.l.b16 %v211
        %v291 = vunpack.c.l.b16 %v212
        %v292 = vunpack.c.l.b16 %v213
        %v293 = vunpack.c.l.b16 %v214
        %v294 = vunpack.c.l.b16 %v215
        %v295 = vunpack.c.l.b16 %v216
        %v296 = vunpack.c.l.b16 %v217
        %v297 = vunpack.c.l.b16 %v218
        %v298 = vunpack.c.l.b16 %v219
        %v299 = vunpack.c.l.b16 %v220
        %v300 = vunpack.c.l.b16 %v221
        %v301 = vunpack.c.l.b16 %v222
        %v302 = vunpack.c.l.b16 %v223
        %v303 = vunpack.c.l.b16 %v224
        %v304 = vunpack.c.l.b16 %v225
        %v305 = vunpack.c.l.b16 %v226
        %v306 = vunpack.c.l.b16 %v227
        %v307 = vunpack.c.l.b16 %v228
        %v308 = vpack.c.b16 %v277, %v276
        %v309 = vpack.c.b16 %v279, %v278
        %v310 = vpack.c.b16 %v281, %v280
        %v311 = vpack.c.b16 %v283, %v282
        %v312 = vpack.c.b16 %v285, %v284
        %v313 = vpack.c.b16 %v287, %v286
        %v314 = vpack.c.b16 %v289, %v288
        %v315 = vpack.c.b16 %v291, %v290
        %v316 = vpack.c.b16 %v293, %v292
        %v317 = vpack.c.b16 %v295, %v294
        %v318 = vpack.c.b16 %v297, %v296
        %v319 = vpack.c.b16 %v299, %v298
        %v320 = vpack.c.b16 %v301, %v300
        %v321 = vpack.c.b16 %v303, %v302
        %v322 = vpack.c.b16 %v305, %v304
        %v323 = vpack.c.b16 %v307, %v306
        %v332 = vunpack.c.l.b16 %v229
        %v333 = vunpack.c.l.b16 %v230
        %v334 = vunpack.c.l.b16 %v231
        %v335 = vunpack.c.l.b16 %v232
        %v336 = vunpack.c.l.b16 %v233
        %v337 = vunpack.c.l.b16 %v234
        %v338 = vunpack.c.l.b16 %v235
        %v339 = vunpack.c.l.b16 %v236
        %v340 = vpack.c.b16 %v333, %v332
        %v341 = vpack.c.b16 %v335, %v334
        %v342 = vpack.c.b16 %v337, %v336
        %v343 = vpack.c.b16 %v339, %v338
        %vm348 = vcmask 523264
        %v350 = vsel %vm348, %v308, 0
        %v353 = vsel %vm348, %v309, 0
        %v356 = vsel %vm348, %v310, 0
        %v359 = vsel %vm348, %v311, 0
        %v362 = vsel %vm348, %v312, 0
        %v365 = vsel %vm348, %v313, 0
        %v368 = vsel %vm348, %v314, 0
        %v371 = vsel %vm348, %v315, 0
        %v374 = vsel %vm348, %v316, 0
        %v377 = vsel %vm348, %v317, 0
        %v380 = vsel %vm348, %v318, 0
        %v383 = vsel %vm348, %v319, 0
        %v386 = vsel %vm348, %v320, 0
        %v389 = vsel %vm348, %v321, 0
        %v392 = vsel %vm348, %v322, 0
        %v395 = vsel %vm348, %v323, 0
        %397 = vmatprep.subr.bf16.mxu0 0
        %398 = vmatpush1.bf16.msra.mxu0 0
        %399 = vmatprep.subr.bf16.mxu0 0
        %400 = vmatpush1.bf16.msra.mxu0 0
        %401 = vmatprep.subr.bf16.mxu0 0
        %402 = vmatpush1.bf16.msra.mxu0 0
        %403 = vmatprep.subr.bf16.mxu0 0
        %404 = vmatpush1.bf16.msra.mxu0 0
        %405 = vmatprep.subr.bf16.mxu0 0
        %406 = vmatpush1.bf16.msra.mxu0 %v343
        %407 = vmatprep.subr.bf16.mxu0 0
        %408 = vmatpush1.bf16.msra.mxu0 %v342
        %409 = vmatprep.subr.bf16.mxu0 0
        %410 = vmatpush1.bf16.msra.mxu0 %v341
        %411 = vmatprep.subr.bf16.mxu0 0
        %412 = vmatpush1.bf16.msra.mxu0 %v340
        %413 = vmatprep.subr.bf16.mxu0 0
        %414 = vmatpush2.bf16.msra.mxu0 0
        %415 = vmatprep.subr.bf16.mxu0 0
        %416 = vmatpush2.bf16.msra.mxu0 0
        %417 = vmatprep.subr.bf16.mxu0 0
        %418 = vmatpush2.bf16.msra.mxu0 0
        %419 = vmatprep.subr.bf16.mxu0 0
        %420 = vmatpush2.bf16.msra.mxu0 0
        %421 = vmatprep.subr.bf16.mxu0 0
        %422 = vmatpush2.bf16.msra.mxu0 0
        %423 = vmatprep.subr.bf16.mxu0 0
        %424 = vmatpush2.bf16.msra.mxu0 0
        %425 = vmatprep.subr.bf16.mxu0 0
        %426 = vmatpush2.bf16.msra.mxu0 0
        %427 = vmatprep.subr.bf16.mxu0 0
        %428 = vmatpush2.bf16.msra.mxu0 0
        %429 = vmatprep.mubr.bf16.mxu0 0
        %430 = vmatmul.mubr.bf16.gmra.mxu0 %v350
        %v431 = vpop.f32.mrf.mxu0
        %v432 = vadd.f32 %v242, %v431
        %v433 = vpop.f32.mrf.mxu0
        %v434 = vpop.f32.mrf.mxu0
        %v435 = vadd.f32 %v242, %v434
        %v436 = vpop.f32.mrf.mxu0
        %437 = vmatprep.mubr.bf16.mxu0 0
        %438 = vmatmul.mubr.bf16.gmra.mxu0 %v353
        %v439 = vpop.f32.mrf.mxu0
        %v440 = vadd.f32 %v242, %v439
        %v441 = vpop.f32.mrf.mxu0
        %v442 = vpop.f32.mrf.mxu0
        %v443 = vadd.f32 %v242, %v442
        %v444 = vpop.f32.mrf.mxu0
        %445 = vmatprep.mubr.bf16.mxu0 0
        %446 = vmatmul.mubr.bf16.gmra.mxu0 %v356
        %v447 = vpop.f32.mrf.mxu0
        %v448 = vadd.f32 %v242, %v447
        %v449 = vpop.f32.mrf.mxu0
        %v450 = vpop.f32.mrf.mxu0
        %v451 = vadd.f32 %v242, %v450
        %v452 = vpop.f32.mrf.mxu0
        %453 = vmatprep.mubr.bf16.mxu0 0
        %454 = vmatmul.mubr.bf16.gmra.mxu0 %v359
        %v455 = vpop.f32.mrf.mxu0
        %v456 = vadd.f32 %v242, %v455
        %v457 = vpop.f32.mrf.mxu0
        %v458 = vpop.f32.mrf.mxu0
        %v459 = vadd.f32 %v242, %v458
        %v460 = vpop.f32.mrf.mxu0
        %461 = vmatprep.mubr.bf16.mxu0 0
        %462 = vmatmul.mubr.bf16.gmra.mxu0 %v362
        %v463 = vpop.f32.mrf.mxu0
        %v464 = vadd.f32 %v242, %v463
        %v465 = vpop.f32.mrf.mxu0
        %v466 = vpop.f32.mrf.mxu0
        %v467 = vadd.f32 %v242, %v466
        %v468 = vpop.f32.mrf.mxu0
        %469 = vmatprep.mubr.bf16.mxu0 0
        %470 = vmatmul.mubr.bf16.gmra.mxu0 %v365
        %v471 = vpop.f32.mrf.mxu0
        %v472 = vadd.f32 %v242, %v471
        %v473 = vpop.f32.mrf.mxu0
        %v474 = vpop.f32.mrf.mxu0
        %v475 = vadd.f32 %v242, %v474
        %v476 = vpop.f32.mrf.mxu0
        %477 = vmatprep.mubr.bf16.mxu0 0
        %478 = vmatmul.mubr.bf16.gmra.mxu0 %v368
        %v479 = vpop.f32.mrf.mxu0
        %v480 = vadd.f32 %v242, %v479
        %v481 = vpop.f32.mrf.mxu0
        %v482 = vpop.f32.mrf.mxu0
        %v483 = vadd.f32 %v242, %v482
        %v484 = vpop.f32.mrf.mxu0
        %485 = vmatprep.mubr.bf16.mxu0 0
        %486 = vmatmul.mubr.bf16.gmra.mxu0 %v371
        %v487 = vpop.f32.mrf.mxu0
        %v488 = vadd.f32 %v242, %v487
        %v489 = vpop.f32.mrf.mxu0
        %v490 = vpop.f32.mrf.mxu0
        %v491 = vadd.f32 %v242, %v490
        %v492 = vpop.f32.mrf.mxu0
        %493 = vmatprep.mubr.bf16.mxu0 0
        %494 = vmatmul.mubr.bf16.gmra.mxu0 %v374
        %v495 = vpop.f32.mrf.mxu0
        %v496 = vadd.f32 %v242, %v495
        %v497 = vpop.f32.mrf.mxu0
        %v498 = vpop.f32.mrf.mxu0
        %v499 = vadd.f32 %v242, %v498
        %v500 = vpop.f32.mrf.mxu0
        %501 = vmatprep.mubr.bf16.mxu0 0
        %502 = vmatmul.mubr.bf16.gmra.mxu0 %v377
        %v503 = vpop.f32.mrf.mxu0
        %v504 = vadd.f32 %v242, %v503
        %v505 = vpop.f32.mrf.mxu0
        %v506 = vpop.f32.mrf.mxu0
        %v507 = vadd.f32 %v242, %v506
        %v508 = vpop.f32.mrf.mxu0
        %509 = vmatprep.mubr.bf16.mxu0 0
        %510 = vmatmul.mubr.bf16.gmra.mxu0 %v380
        %v511 = vpop.f32.mrf.mxu0
        %v512 = vadd.f32 %v242, %v511
        %v513 = vpop.f32.mrf.mxu0
        %v514 = vpop.f32.mrf.mxu0
        %v515 = vadd.f32 %v242, %v514
        %v516 = vpop.f32.mrf.mxu0
        %517 = vmatprep.mubr.bf16.mxu0 0
        %518 = vmatmul.mubr.bf16.gmra.mxu0 %v383
        %v519 = vpop.f32.mrf.mxu0
        %v520 = vadd.f32 %v242, %v519
        %v521 = vpop.f32.mrf.mxu0
        %v522 = vpop.f32.mrf.mxu0
        %v523 = vadd.f32 %v242, %v522
        %v524 = vpop.f32.mrf.mxu0
        %525 = vmatprep.mubr.bf16.mxu0 0
        %526 = vmatmul.mubr.bf16.gmra.mxu0 %v386
        %v527 = vpop.f32.mrf.mxu0
        %v528 = vadd.f32 %v242, %v527
        %v529 = vpop.f32.mrf.mxu0
        %v530 = vpop.f32.mrf.mxu0
        %v531 = vadd.f32 %v242, %v530
        %v532 = vpop.f32.mrf.mxu0
        %533 = vmatprep.mubr.bf16.mxu0 0
        %534 = vmatmul.mubr.bf16.gmra.mxu0 %v389
        %v535 = vpop.f32.mrf.mxu0
        %v536 = vadd.f32 %v242, %v535
        %v537 = vpop.f32.mrf.mxu0
        %v538 = vpop.f32.mrf.mxu0
        %v539 = vadd.f32 %v242, %v538
        %v540 = vpop.f32.mrf.mxu0
        %541 = vmatprep.mubr.bf16.mxu0 0
        %542 = vmatmul.mubr.bf16.gmra.mxu0 %v392
        %v543 = vpop.f32.mrf.mxu0
        %v544 = vadd.f32 %v242, %v543
        %v545 = vpop.f32.mrf.mxu0
        %v546 = vpop.f32.mrf.mxu0
        %v547 = vadd.f32 %v242, %v546
        %v548 = vpop.f32.mrf.mxu0
        %549 = vmatprep.mubr.bf16.mxu0 0
        %550 = vmatmul.mubr.bf16.gmra.mxu0 %v395
        %v551 = vpop.f32.mrf.mxu0
        %v552 = vadd.f32 %v242, %v551
        %v553 = vpop.f32.mrf.mxu0
        %v554 = vpop.f32.mrf.mxu0
        %v555 = vadd.f32 %v242, %v554
        %v556 = vpop.f32.mrf.mxu0
        %557 = vdwg.mxu0
        %v558 = vmul.f32 %v432, 0.1
        %v559 = vmul.f32 %v435, 0.1
        %v560 = vmul.f32 %v440, 0.1
        %v561 = vmul.f32 %v443, 0.1
        %v562 = vmul.f32 %v448, 0.1
        %v563 = vmul.f32 %v451, 0.1
        %v564 = vmul.f32 %v456, 0.1
        %v565 = vmul.f32 %v459, 0.1
        %v566 = vmul.f32 %v464, 0.1
        %v567 = vmul.f32 %v467, 0.1
        %v568 = vmul.f32 %v472, 0.1
        %v569 = vmul.f32 %v475, 0.1
        %v570 = vmul.f32 %v480, 0.1
        %v571 = vmul.f32 %v483, 0.1
        %v572 = vmul.f32 %v488, 0.1
        %v573 = vmul.f32 %v491, 0.1
        %v574 = vmul.f32 %v496, 0.1
        %v575 = vmul.f32 %v499, 0.1
        %v576 = vmul.f32 %v504, 0.1
        %v577 = vmul.f32 %v507, 0.1
        %v578 = vmul.f32 %v512, 0.1
        %v579 = vmul.f32 %v515, 0.1
        %v580 = vmul.f32 %v520, 0.1
        %v581 = vmul.f32 %v523, 0.1
        %v582 = vmul.f32 %v528, 0.1
        %v583 = vmul.f32 %v531, 0.1
        %v584 = vmul.f32 %v536, 0.1
        %v585 = vmul.f32 %v539, 0.1
        %v586 = vmul.f32 %v544, 0.1
        %v587 = vmul.f32 %v547, 0.1
        %v588 = vmul.f32 %v552, 0.1
        %v589 = vmul.f32 %v555, 0.1
        %v590 = vmax.f32 %v432, %v558
        %v591 = vmax.f32 %v435, %v559
        %v592 = vmax.f32 %v440, %v560
        %v593 = vmax.f32 %v443, %v561
        %v594 = vmax.f32 %v448, %v562
        %v595 = vmax.f32 %v451, %v563
        %v596 = vmax.f32 %v456, %v564
        %v597 = vmax.f32 %v459, %v565
        %v598 = vmax.f32 %v464, %v566
        %v599 = vmax.f32 %v467, %v567
        %v600 = vmax.f32 %v472, %v568
        %v601 = vmax.f32 %v475, %v569
        %v602 = vmax.f32 %v480, %v570
        %v603 = vmax.f32 %v483, %v571
        %v604 = vmax.f32 %v488, %v572
        %v605 = vmax.f32 %v491, %v573
        %v606 = vmax.f32 %v496, %v574
        %v607 = vmax.f32 %v499, %v575
        %v608 = vmax.f32 %v504, %v576
        %v609 = vmax.f32 %v507, %v577
        %v610 = vmax.f32 %v512, %v578
        %v611 = vmax.f32 %v515, %v579
        %v612 = vmax.f32 %v520, %v580
        %v613 = vmax.f32 %v523, %v581
        %v614 = vmax.f32 %v528, %v582
        %v615 = vmax.f32 %v531, %v583
        %v616 = vmax.f32 %v536, %v584
        %v617 = vmax.f32 %v539, %v585
        %v618 = vmax.f32 %v544, %v586
        %v619 = vmax.f32 %v547, %v587
        %v620 = vmax.f32 %v552, %v588
        %v621 = vmax.f32 %v555, %v589
        %v622 = vpack.c.bf16 %v591, %v590
        %v623 = vpack.c.bf16 %v593, %v592
        %v624 = vpack.c.bf16 %v595, %v594
        %v625 = vpack.c.bf16 %v597, %v596
        %v626 = vpack.c.bf16 %v599, %v598
        %v627 = vpack.c.bf16 %v601, %v600
        %v628 = vpack.c.bf16 %v603, %v602
        %v629 = vpack.c.bf16 %v605, %v604
        %v630 = vpack.c.bf16 %v607, %v606
        %v631 = vpack.c.bf16 %v609, %v608
        %v632 = vpack.c.bf16 %v611, %v610
        %v633 = vpack.c.bf16 %v613, %v612
        %v634 = vpack.c.bf16 %v615, %v614
        %v635 = vpack.c.bf16 %v617, %v616
        %v636 = vpack.c.bf16 %v619, %v618
        %v637 = vpack.c.bf16 %v621, %v620
        %v654 = vunpack.c.l.b16 %v622
        %v655 = vunpack.c.h.b16 %v622
        %v656 = vunpack.c.l.b16 %v623
        %v657 = vunpack.c.h.b16 %v623
        %v658 = vunpack.c.l.b16 %v624
        %v659 = vunpack.c.h.b16 %v624
        %v660 = vunpack.c.l.b16 %v625
        %v661 = vunpack.c.h.b16 %v625
        %v662 = vunpack.c.l.b16 %v626
        %v663 = vunpack.c.h.b16 %v626
        %v664 = vunpack.c.l.b16 %v627
        %v665 = vunpack.c.h.b16 %v627
        %v666 = vunpack.c.l.b16 %v628
        %v667 = vunpack.c.h.b16 %v628
        %v668 = vunpack.c.l.b16 %v629
        %v669 = vunpack.c.h.b16 %v629
        %v670 = vunpack.c.l.b16 %v630
        %v671 = vunpack.c.h.b16 %v630
        %v672 = vunpack.c.l.b16 %v631
        %v673 = vunpack.c.h.b16 %v631
        %v674 = vunpack.c.l.b16 %v632
        %v675 = vunpack.c.h.b16 %v632
        %v676 = vunpack.c.l.b16 %v633
        %v677 = vunpack.c.h.b16 %v633
        %v678 = vunpack.c.l.b16 %v634
        %v679 = vunpack.c.h.b16 %v634
        %v680 = vunpack.c.l.b16 %v635
        %v681 = vunpack.c.h.b16 %v635
        %v682 = vunpack.c.l.b16 %v636
        %v683 = vunpack.c.h.b16 %v636
        %v684 = vunpack.c.l.b16 %v637
        %v685 = vunpack.c.h.b16 %v637
        %v686 = vpack.c.b16 %v654, %v654
        %v687 = vpack.c.b16 %v655, %v655
        %v688 = vpack.c.b16 %v656, %v656
        %v689 = vpack.c.b16 %v657, %v657
        %v690 = vpack.c.b16 %v658, %v658
        %v691 = vpack.c.b16 %v659, %v659
        %v692 = vpack.c.b16 %v660, %v660
        %v693 = vpack.c.b16 %v661, %v661
        %v694 = vpack.c.b16 %v662, %v662
        %v695 = vpack.c.b16 %v663, %v663
        %v696 = vpack.c.b16 %v664, %v664
        %v697 = vpack.c.b16 %v665, %v665
        %v698 = vpack.c.b16 %v666, %v666
        %v699 = vpack.c.b16 %v667, %v667
        %v700 = vpack.c.b16 %v668, %v668
        %v701 = vpack.c.b16 %v669, %v669
        %v702 = vpack.c.b16 %v670, %v670
        %v703 = vpack.c.b16 %v671, %v671
        %v704 = vpack.c.b16 %v672, %v672
        %v705 = vpack.c.b16 %v673, %v673
        %v706 = vpack.c.b16 %v674, %v674
        %v707 = vpack.c.b16 %v675, %v675
        %v708 = vpack.c.b16 %v676, %v676
        %v709 = vpack.c.b16 %v677, %v677
        %v710 = vpack.c.b16 %v678, %v678
        %v711 = vpack.c.b16 %v679, %v679
        %v712 = vpack.c.b16 %v680, %v680
        %v713 = vpack.c.b16 %v681, %v681
        %v714 = vpack.c.b16 %v682, %v682
        %v715 = vpack.c.b16 %v683, %v683
        %v716 = vpack.c.b16 %v684, %v684
        %v717 = vpack.c.b16 %v685, %v685
        %750 = vst [vmem:[%s176] sm:$0xf] %v686
        %751 = vst [vmem:[%s176 + $0x4] sm:$0xf] %v687
        %752 = vst [vmem:[%s176 + $0x8] sm:$0xf] %v688
        %753 = vst [vmem:[%s176 + $0xc] sm:$0xf] %v689
        %754 = vst [vmem:[%s176 + $0x10] sm:$0xf] %v690
        %755 = vst [vmem:[%s176 + $0x14] sm:$0xf] %v691
        %756 = vst [vmem:[%s176 + $0x18] sm:$0xf] %v692
        %757 = vst [vmem:[%s176 + $0x1c] sm:$0xf] %v693
        %758 = vst [vmem:[%s176 + $0x20] sm:$0xf] %v694
        %759 = vst [vmem:[%s176 + $0x24] sm:$0xf] %v695
        %760 = vst [vmem:[%s176 + $0x28] sm:$0xf] %v696
        %761 = vst [vmem:[%s176 + $0x2c] sm:$0xf] %v697
        %762 = vst [vmem:[%s176 + $0x30] sm:$0xf] %v698
        %763 = vst [vmem:[%s176 + $0x34] sm:$0xf] %v699
        %764 = vst [vmem:[%s176 + $0x38] sm:$0xf] %v700
        %765 = vst [vmem:[%s176 + $0x3c] sm:$0xf] %v701
        %766 = vst [vmem:[%s176 + $0x40] sm:$0xf] %v702
        %767 = vst [vmem:[%s176 + $0x44] sm:$0xf] %v703
        %768 = vst [vmem:[%s176 + $0x48] sm:$0xf] %v704
        %769 = vst [vmem:[%s176 + $0x4c] sm:$0xf] %v705
        %770 = vst [vmem:[%s176 + $0x50] sm:$0xf] %v706
        %771 = vst [vmem:[%s176 + $0x54] sm:$0xf] %v707
        %772 = vst [vmem:[%s176 + $0x58] sm:$0xf] %v708
        %773 = vst [vmem:[%s176 + $0x5c] sm:$0xf] %v709
        %774 = vst [vmem:[%s176 + $0x60] sm:$0xf] %v710
        %775 = vst [vmem:[%s176 + $0x64] sm:$0xf] %v711
        %776 = vst [vmem:[%s176 + $0x68] sm:$0xf] %v712
        %777 = vst [vmem:[%s176 + $0x6c] sm:$0xf] %v713
        %778 = vst [vmem:[%s176 + $0x70] sm:$0xf] %v714
        %779 = vst [vmem:[%s176 + $0x74] sm:$0xf] %v715
        %780 = vst [vmem:[%s176 + $0x78] sm:$0xf] %v716
        %781 = vst [vmem:[%s176 + $0x7c] sm:$0xf] %v717
        %s782 = sand.u32 %s93, 1
        %s783 = scalar_lea.sflag [#allocation3], %s782
        %s784 = sand.u32 %s93, 1
        %s785 = smul.addr %s784, 128
        %s786 = scalar_lea.vmem [#allocation2], %s785
        // Predicated region
        $region33: #{tpu_custom_call.1} parent=31 // pred_check
          %p787 = pneg %p103
        $region34: #{tpu_custom_call.1} parent=31 // pred_check_branch
          %789 = sbr.rel (%p787) target = $region36
        $region35: #{tpu_custom_call.1} parent=31 // pred_region
          %s790 = smul.u32 32, %s17
          %s791 = ssub.s32 125, %s790
          %p792 = scmp.lt.s32.totalorder %s791, 32
          %s793 = scalar_select %p792, %s791, 32
          %s794 = smul.u32 64, %s793
          %s796 = ssub.s32 2048, %s794
          %797 = vsyncadd %s783, %s796
          %p798 = scmp.ne.s32.totalorder 0, %s794
          %s799 = smul.addr %s790, 64
          %s800 = scalar_lea.hbm %s3, %s799
          %s801 = smul.u32 4, %s793
          %s802 = sshll.u32 %s786, 4
          %s803 = int_to_ptr.vmem [resolvable:$true] %s802
          %s804 = sshll.u32 %s801, 4
          %808 = dma.vmem_to_hbm [thread:$0]  (%p798), %s803, %s804, %s800, %s783, 64, 64, 4
        $region36: #{tpu_custom_call.1} parent=31 // pred_fallthru
          _
      $region32: #{tpu_custom_call.1} parent=5 // pred_fallthru
        _
      %p809 = scmp.le.s32.totalorder 2, %s12
      // Predicated region
      $region37: #{tpu_custom_call.1} parent=5 // pred_check
        %p810 = pneg %p809
      $region38: #{tpu_custom_call.1} parent=5 // pred_check_branch
        %812 = sbr.rel (%p810) target = $region40
      $region39: #{tpu_custom_call.1} parent=5 // pred_region
        %s813 = ssub.s32 %s12, 2
        // Predicated region
        $region41: #{tpu_custom_call.1} parent=39 // pred_check
          %p814 = pneg %p109
        $region42: #{tpu_custom_call.1} parent=39 // pred_check_branch
          %816 = sbr.rel (%p814) target = $region44
        $region43: #{tpu_custom_call.1} parent=39 // pred_region
          %s817 = sand.u32 %s94, 1
          %s818 = scalar_lea.sflag [#allocation3], %s817
          %s819 = sand.u32 %s94, 1
          %s820 = smul.addr %s819, 128
          %s821 = scalar_lea.vmem [#allocation2], %s820
          %822 = dma.done %s818, 2048
        $region44: #{tpu_custom_call.1} parent=39 // pred_fallthru
          _
      $region40: #{tpu_custom_call.1} parent=5 // pred_fallthru
        _
    $region6: #{tpu_custom_call.1} parent=1 // loop_footer
      %s16 = sadd.s32 1, %s12
    $region7: #{tpu_custom_call.1} parent=1 // loop_footer_branch
      %11 = sbr.rel target = $region3
    $region8: #{tpu_custom_call.1} parent=1 // loop_exit
      _
    %823 = vsyncpa [#allocation3], 1
    %s824 = scalar_lea.sflag [#allocation3], 1
    %825 = vsyncpa %s824, 1

</llo_original>
